<compile_context>
chip_gen: v6e
topology: v6e:2x2x1
jax: 0.10.0
libtpu: 0.0.40
codegen_flags: <defaults>
</compile_context>

<pallas_src>
import jax
import jax.numpy as jnp
from jax.experimental import pallas as pl
from jax.experimental.pallas import tpu as pltpu


def biasmf_kernel(uf_ref, if_ref, bias_ref, out_ref):
    """out = sum(user_factor * item_factor, axis=F) + (user_bias + item_bias).

    uf_ref, if_ref : (F, TB)  -- factors on sublanes, batch on lanes
    bias_ref       : (1, TB)  -- user_bias + item_bias, pre-added in wrapper
    out_ref        : (1, TB)
    """
    uf = uf_ref[...].astype(jnp.float32)             # upcast (no-op for f32)
    itf = if_ref[...].astype(jnp.float32)
    dot = jnp.sum(uf * itf, axis=0, keepdims=True)   # (1, TB) sublane reduce
    out_ref[...] = dot + bias_ref[...]               # lane-dense full store


def init_params(key, users, items, factors):
    """Deterministic init mirroring nn.Embedding defaults (N(0, 1))."""
    k1, k2, k3, k4 = jax.random.split(key, 4)
    return {
        "user_factor": jax.random.normal(k1, (users, factors), jnp.float32),
        "item_factor": jax.random.normal(k2, (items, factors), jnp.float32),
        "user_biases": jax.random.normal(k3, (users, 1), jnp.float32),
        "item_biases": jax.random.normal(k4, (items, 1), jnp.float32),
    }


def prepare_params(params, factor_dtype=jnp.float32):
    """One-time (per-parameter-update) layout prep: transpose the factor
    tables so per-call gathers produce lane-dense (F, B) slabs directly,
    and optionally store factors in bf16 to halve gather/DMA bytes."""
    return {
        "user_factor_T": params["user_factor"].T.astype(factor_dtype),  # (F, U)
        "item_factor_T": params["item_factor"].T.astype(factor_dtype),  # (F, I)
        "user_biases": params["user_biases"].reshape(-1),               # (U,)
        "item_biases": params["item_biases"].reshape(-1),               # (I,)
    }


def _round_up(x, m):
    return pl.cdiv(x, m) * m


def biasmf_forward(prepared, user, item, *, max_tile_b=16384):
    F = prepared["user_factor_T"].shape[0]
    B = user.shape[0]

    # --- batch tiling -------------------------------------------------------
    # Pad only to a lane multiple (128); then choose the tile count so that
    #   * each tile is <= max_tile_b lanes (VMEM / v5e scoped-VMEM friendly),
    #   * there are >= 2 tiles whenever possible (v7x megacore via "parallel").
    Bp128 = _round_up(max(B, 1), 128)
    num_tiles = pl.cdiv(Bp128, max_tile_b)
    if Bp128 >= 256:
        num_tiles = max(num_tiles, 2)
    TB = _round_up(pl.cdiv(Bp128, num_tiles), 128)
    Bp = TB * num_tiles
    pad = Bp - B

    # Pad indices with a valid row (0); padded outputs are discarded below.
    user_p = jnp.pad(user, (0, pad))
    item_p = jnp.pad(item, (0, pad))

    # XLA-side gathers, already in the kernel's lane-dense layout
    # (column gather from the pre-transposed tables -> no batch-sized .T).
    uf_t = prepared["user_factor_T"][:, user_p]            # (F, Bp)
    if_t = prepared["item_factor_T"][:, item_p]            # (F, Bp)
    bias = (prepared["user_biases"][user_p]
            + prepared["item_biases"][item_p]).reshape(1, Bp)  # (1, Bp)

    itemsize = jnp.dtype(uf_t.dtype).itemsize
    cost = pl.CostEstimate(
        flops=2 * (F + 1) * Bp,
        transcendentals=0,
        bytes_accessed=2 * F * Bp * itemsize + 2 * Bp * 4,
    )

    out = pl.pallas_call(
        biasmf_kernel,
        out_shape=jax.ShapeDtypeStruct((1, Bp), jnp.float32),
        grid_spec=pl.GridSpec(
            grid=(num_tiles,),
            in_specs=[
                pl.BlockSpec((F, TB), lambda i: (0, i)),
                pl.BlockSpec((F, TB), lambda i: (0, i)),
                pl.BlockSpec((1, TB), lambda i: (0, i)),
            ],
            out_specs=pl.BlockSpec((1, TB), lambda i: (0, i)),
        ),
        compiler_params=pltpu.CompilerParams(
            dimension_semantics=("parallel",),
        ),
        cost_estimate=cost,
    )(uf_t, if_t, bias)

    # Drop padding; squeeze to match `preds.squeeze()` in the PyTorch module.
    return jnp.squeeze(out[:, :B])


if __name__ == "__main__":
    users, items, factors = 10, 12, 32
    batch = 8

    key = jax.random.PRNGKey(0)
    pkey, ukey, ikey = jax.random.split(key, 3)
    params = init_params(pkey, users, items, factors)
    prepared = prepare_params(params)  # f32 factors -> bit-matches reference

    user_idx = jax.random.randint(ukey, (batch,), 0, users, dtype=jnp.int32)
    item_idx = jax.random.randint(ikey, (batch,), 0, items, dtype=jnp.int32)

    preds = biasmf_forward(prepared, user_idx, item_idx)
    preds = jax.block_until_ready(preds)

    # Pure-JAX reference check (mirrors the PyTorch forward exactly).
    uf = params["user_factor"][user_idx]
    itf = params["item_factor"][item_idx]
    ref = (uf * itf).sum(axis=1, keepdims=True) \
        + params["user_biases"][user_idx] + params["item_biases"][item_idx]
    ref = jnp.squeeze(ref)

    assert preds.shape == (batch,), preds.shape
    assert jnp.allclose(preds, ref, atol=1e-5, rtol=1e-5), (preds, ref)

    print("KERNEL_OK")
</pallas_src>

<mosaic_0001>
module attributes {stable_mosaic.version = 11 : i64} {
  func.func @biasmf_kernel(%arg0: i32, %arg1: memref<32x128xf32, #tpu.memory_space<vmem>>, %arg2: memref<32x128xf32, #tpu.memory_space<vmem>>, %arg3: memref<1x128xf32, #tpu.memory_space<vmem>>, %arg4: memref<1x128xf32, #tpu.memory_space<vmem>>) attributes {dimension_semantics = [#tpu.dimension_semantics<parallel>], iteration_bounds = array<i64: 1>, scalar_prefetch = 0 : i64, scratch_operands = 0 : i64, tpu.core_type = #tpu.core_type<tc>, window_params = [{transform_indices = @transform_0, window_bounds = array<i64: 32, 128>}, {transform_indices = @transform_1, window_bounds = array<i64: 32, 128>}, {transform_indices = @transform_2, window_bounds = array<i64: 1, 128>}, {transform_indices = @transform_3, window_bounds = array<i64: 1, 128>}]} {
    %c0 = arith.constant 0 : index
    %c0_0 = arith.constant 0 : index
    %0 = vector.load %arg1[%c0, %c0_0] : memref<32x128xf32, #tpu.memory_space<vmem>>, vector<32x128xf32>
    %c0_1 = arith.constant 0 : index
    %c0_2 = arith.constant 0 : index
    %1 = vector.load %arg2[%c0_1, %c0_2] : memref<32x128xf32, #tpu.memory_space<vmem>>, vector<32x128xf32>
    %2 = arith.mulf %0, %1 : vector<32x128xf32>
    %cst = arith.constant dense<0.000000e+00> : vector<128xf32>
    %3 = vector.multi_reduction <add>, %2, %cst [0] : vector<32x128xf32> to vector<128xf32>
    %4 = vector.shape_cast %3 : vector<128xf32> to vector<1x128xf32>
    %c0_3 = arith.constant 0 : index
    %c0_4 = arith.constant 0 : index
    %5 = vector.load %arg3[%c0_3, %c0_4] : memref<1x128xf32, #tpu.memory_space<vmem>>, vector<1x128xf32>
    %6 = arith.addf %4, %5 : vector<1x128xf32>
    %c0_5 = arith.constant 0 : index
    %c0_6 = arith.constant 0 : index
    %7 = vector.load %arg4[%c0_5, %c0_6] : memref<1x128xf32, #tpu.memory_space<vmem>>, vector<1x128xf32>
    tpu.vector_store %arg4[%c0_5, %c0_6], %6 {strides = array<i32>} : memref<1x128xf32, #tpu.memory_space<vmem>>, vector<1x128xf32>,
    return
  }
  func.func @transform_0(%arg0: i32) -> (i32, i32) {
    %c0_i32 = arith.constant 0 : i32
    %c0_i32_0 = arith.constant 0 : i32
    return %c0_i32, %arg0 : i32, i32
  }
  func.func @transform_1(%arg0: i32) -> (i32, i32) {
    %c0_i32 = arith.constant 0 : i32
    %c0_i32_0 = arith.constant 0 : i32
    return %c0_i32, %arg0 : i32, i32
  }
  func.func @transform_2(%arg0: i32) -> (i32, i32) {
    %c0_i32 = arith.constant 0 : i32
    %c0_i32_0 = arith.constant 0 : i32
    return %c0_i32, %arg0 : i32, i32
  }
  func.func @transform_3(%arg0: i32) -> (i32, i32) {
    %c0_i32 = arith.constant 0 : i32
    %c0_i32_0 = arith.constant 0 : i32
    return %c0_i32, %arg0 : i32, i32
  }
}

</mosaic_0001>

<llo_original>
// kernel: tpu_custom_call.1
$region0: #{tpu_custom_call.1}
  #allocation0 [shape = 'u32[]', space=smem, size = 0x4, offset = 0x4, fixed_abs, tag = 'smem constant byte address 0x4 - core index']
  #allocation1 [shape = 'u32[144,128]{1,0:T(1,128)}', space=vmem, size = 0x12000, scoped, tag = 'internal scratch']
  %s0 = inlined_call_operand.hbm [shape: f32[32,128], index: 0, kind: input, shape index: {}]
  %s1 = inlined_call_operand.hbm [shape: f32[32,128], index: 1, kind: input, shape index: {}]
  %s2 = inlined_call_operand.vmem [shape: f32[1,128], index: 2, kind: input, shape index: {}]
  %s3 = inlined_call_operand.hbm [shape: f32[1,128], index: 3, kind: output, shape index: {}]
  %s4 = sld [smem:[#allocation0]]
  $region30: #{tpu_custom_call.1} parent=0
    _
  %s6 = ssub.s32 1, %s4
  %s7 = scalar_select 0, %s6, %s4
  $region1: #{tpu_custom_call.1} parent=0
    #allocation2 [shape = 'u8[16384]{0}', space=vmem, size = 0x4000, scoped, tag = 'input window, operand 0, single buffered']
    #allocation3 [shape = 's32[1]{0}', space=sflag, size = 0x4, scoped, tag = 'scoped memory for tpu_custom_call.1']
    #allocation4 [shape = 's32[1]{0}', space=sflag, size = 0x4, scoped, tag = 'scoped memory for tpu_custom_call.1']
    #allocation5 [shape = 'u8[16384]{0}', space=vmem, size = 0x4000, scoped, tag = 'input window, operand 1, single buffered']
    #allocation6 [shape = 's32[1]{0}', space=sflag, size = 0x4, scoped, tag = 'scoped memory for tpu_custom_call.1']
    #allocation7 [shape = 'u8[512]{0}', space=vmem, size = 0x400, scoped, tag = 'output window, operand 0, single buffered']
    %8 = vsyncpa [#allocation3], 0
    %9 = vsyncpa [#allocation6], 0
    %10 = vsyncpa [#allocation4], 0
    // Predicated region
    $region2: #{tpu_custom_call.1} parent=1 // pred_check
      _
    $region3: #{tpu_custom_call.1} parent=1 // pred_check_branch
      %12 = sbr.rel (0) target = $region5
    $region4: #{tpu_custom_call.1} parent=1 // pred_region
      %s14 = ssub.s32 512, 512
      %15 = vsyncadd [#allocation3], %s14
      %s16 = sshll.u32 [#allocation2], 4
      %s17 = int_to_ptr.vmem [resolvable:$true] %s16
      %22 = dma.hbm_to_vmem [thread:$0]  %s0, 512, %s17, [#allocation3], 128, 128, 8
    $region5: #{tpu_custom_call.1} parent=1 // pred_fallthru
      _
    // Predicated region
    $region6: #{tpu_custom_call.1} parent=1 // pred_check
      _
    $region7: #{tpu_custom_call.1} parent=1 // pred_check_branch
      %24 = sbr.rel (0) target = $region9
    $region8: #{tpu_custom_call.1} parent=1 // pred_region
      %s26 = ssub.s32 512, 512
      %27 = vsyncadd [#allocation6], %s26
      %s28 = sshll.u32 [#allocation5], 4
      %s29 = int_to_ptr.vmem [resolvable:$true] %s28
      %34 = dma.hbm_to_vmem [thread:$0]  %s1, 512, %s29, [#allocation6], 128, 128, 8
    $region9: #{tpu_custom_call.1} parent=1 // pred_fallthru
      _
    // Predicated region
    $region10: #{tpu_custom_call.1} parent=1 // pred_check
      _
    $region11: #{tpu_custom_call.1} parent=1 // pred_check_branch
      %36 = sbr.rel (0) target = $region13
    $region12: #{tpu_custom_call.1} parent=1 // pred_region
      _
    $region13: #{tpu_custom_call.1} parent=1 // pred_fallthru
      _
    // Predicated region
    $region14: #{tpu_custom_call.1} parent=1 // pred_check
      _
    $region15: #{tpu_custom_call.1} parent=1 // pred_check_branch
      %38 = sbr.rel (0) target = $region17
    $region16: #{tpu_custom_call.1} parent=1 // pred_region
      %39 = dma.done [#allocation3], 512
    $region17: #{tpu_custom_call.1} parent=1 // pred_fallthru
      _
    // Predicated region
    $region18: #{tpu_custom_call.1} parent=1 // pred_check
      _
    $region19: #{tpu_custom_call.1} parent=1 // pred_check_branch
      %41 = sbr.rel (0) target = $region21
    $region20: #{tpu_custom_call.1} parent=1 // pred_region
      %42 = dma.done [#allocation6], 512
    $region21: #{tpu_custom_call.1} parent=1 // pred_fallthru
      _
    %v43 = vld [vmem:[#allocation2] sm:$0xff]
    %v44 = vld [vmem:[#allocation2 + $0x8] sm:$0xff]
    %v45 = vld [vmem:[#allocation2 + $0x10] sm:$0xff]
    %v46 = vld [vmem:[#allocation2 + $0x18] sm:$0xff]
    %v47 = vld [vmem:[#allocation5] sm:$0xff]
    %v48 = vld [vmem:[#allocation5 + $0x8] sm:$0xff]
    %v49 = vld [vmem:[#allocation5 + $0x10] sm:$0xff]
    %v50 = vld [vmem:[#allocation5 + $0x18] sm:$0xff]
    %v51 = vmul.f32 %v43, %v47
    %v52 = vmul.f32 %v44, %v48
    %v53 = vmul.f32 %v45, %v49
    %v54 = vmul.f32 %v46, %v50
    %v55 = vadd.f32 %v51, %v52
    %v56 = vadd.f32 %v55, %v53
    %v57 = vadd.f32 %v56, %v54
    %v58 = vrot.slane %v57, 4
    %v59 = vadd.f32 %v57, %v58
    %v60 = vrot.slane %v59, 2
    %v61 = vadd.f32 %v59, %v60
    %v62 = vrot.slane %v61, 1
    %v63 = vadd.f32 %v61, %v62
    %v64 = vld [vmem:[%s2] sm:$0x1]
    %v65 = vadd.f32 %v63, %v64
    %66 = vst [vmem:[#allocation7] sm:$0x1] %v65
    // Predicated region
    $region22: #{tpu_custom_call.1} parent=1 // pred_check
      _
    $region23: #{tpu_custom_call.1} parent=1 // pred_check_branch
      %68 = sbr.rel (0) target = $region25
    $region24: #{tpu_custom_call.1} parent=1 // pred_region
      %s70 = ssub.s32 16, 16
      %71 = vsyncadd [#allocation4], %s70
      %s73 = sshll.u32 [#allocation7], 4
      %s74 = int_to_ptr.vmem [resolvable:$true] %s73
      %76 = dma.vmem_to_hbm [thread:$0]  %s74, 16, %s3, [#allocation4]
    $region25: #{tpu_custom_call.1} parent=1 // pred_fallthru
      _
    // Predicated region
    $region26: #{tpu_custom_call.1} parent=1 // pred_check
      _
    $region27: #{tpu_custom_call.1} parent=1 // pred_check_branch
      %78 = sbr.rel (0) target = $region29
    $region28: #{tpu_custom_call.1} parent=1 // pred_region
      %79 = dma.done [#allocation4], 16
    $region29: #{tpu_custom_call.1} parent=1 // pred_fallthru
      _
    %80 = vsyncpa [#allocation3], 1
    %81 = vsyncpa [#allocation6], 1
    %82 = vsyncpa [#allocation4], 1

</llo_original>
